<compile_context>
chip_gen: v7x
topology: tpu7x:2x2x1
jax: 0.10.0
libtpu: 0.0.40
codegen_flags: <defaults>
</compile_context>

<pallas_src>
import functools

import jax
import jax.numpy as jnp
from jax.experimental import pallas as pl
from jax.experimental.pallas import tpu as pltpu

EPS = 1e-5            # nn.BatchNorm1d default eps
NEG_INF = -1e30       # bias for padded output classes: exp(NEG_INF - max) == 0
D_IN, D_H1 = 28 * 28, 256
D_H2, D_H2P = 124, 128          # hidden2 padded 124 -> 128 (lane-dense)
D_OUT, D_OUTP = 10, 128         # logits padded 10 -> 128 (lane-dense store)
DEFAULT_TILE_B = 512            # 256-multiple for v6e/v7x MXU, ~85%+ HBM roofline
MAX_TILE_B = 2048               # keeps stage-1 working set < v5e 16 MiB scoped VMEM


def _round_up(n, m):
    return (n + m - 1) // m * m


# --------------------------- fused single-tile kernel -------------------------

def _fused_kernel(x_ref, w1_ref, g1_ref, be1_ref, w2_ref, g2_ref, be2_ref,
                  w3_ref, b3_ref, out_ref, *, b_real, b_pad):
    """Whole forward pass for one batch tile; h1/h2 stay on-chip.

    BatchNorm is training-mode (biased variance over the batch); Linear biases
    b1/b2 are dropped because the following BN cancels them exactly.
    """
    inv_n = 1.0 / b_real

    # ---- layer 1: h1 = x @ W1 ; BN1 scale/shift from in-tile stats ----
    h1 = jnp.dot(x_ref[...], w1_ref[...], preferred_element_type=jnp.float32)
    mean1 = jnp.sum(h1, axis=0, keepdims=True) * inv_n
    var1 = jnp.maximum(jnp.sum(h1 * h1, axis=0, keepdims=True) * inv_n
                       - mean1 * mean1, 0.0)
    scale1 = g1_ref[...] * jax.lax.rsqrt(var1 + EPS)
    shift1 = be1_ref[...] - scale1 * mean1
    r1 = jnp.maximum(h1 * scale1 + shift1, 0.0)
    if b_pad != b_real:  # static branch: zero padded rows before BN2 stats
        row = jax.lax.broadcasted_iota(jnp.int32, (b_pad, 1), 0)
        r1 = jnp.where(row < b_real, r1, 0.0)

    # ---- layer 2: h2 = r1 @ W2 ; BN2 scale/shift from in-tile stats ----
    h2 = jnp.dot(r1.astype(w2_ref.dtype), w2_ref[...],
                 preferred_element_type=jnp.float32)
    mean2 = jnp.sum(h2, axis=0, keepdims=True) * inv_n
    var2 = jnp.maximum(jnp.sum(h2 * h2, axis=0, keepdims=True) * inv_n
                       - mean2 * mean2, 0.0)
    scale2 = g2_ref[...] * jax.lax.rsqrt(var2 + EPS)   # padded feats: gamma=0 => 0
    shift2 = be2_ref[...] - scale2 * mean2
    r2 = jnp.maximum(h2 * scale2 + shift2, 0.0)

    # ---- layer 3: logits -> log_softmax (padded classes carry -1e30 bias) ----
    logits = jnp.dot(r2.astype(w3_ref.dtype), w3_ref[...],
                     preferred_element_type=jnp.float32) + b3_ref[...]
    m = jnp.max(logits, axis=1, keepdims=True)
    shifted = logits - m
    lse = jnp.log(jnp.sum(jnp.exp(shifted), axis=1, keepdims=True))
    out_ref[...] = shifted - lse


# --------------------------- multi-tile kernels --------------------------------

def _layer1_kernel(x_ref, w1_ref, h1_ref, stats_ref):
    """h1 = x @ W1 (bias cancelled by the following BatchNorm).

    Emits per-tile stacked [sum, sum_sq] of h1 over the batch rows (f32) in a
    single store.  Zero-padded batch rows produce h1 == 0 -> contribute nothing.
    """
    h1 = jnp.dot(x_ref[...], w1_ref[...], preferred_element_type=jnp.float32)
    h1_ref[...] = h1.astype(h1_ref.dtype)
    stats_ref[0] = jnp.concatenate(
        [jnp.sum(h1, axis=0, keepdims=True),
         jnp.sum(h1 * h1, axis=0, keepdims=True)], axis=0)


def _layer2_kernel(h1_ref, stats1_ref, g1_ref, be1_ref, w2_ref,
                   h2_ref, stats2_ref, *, tile_b, b_real, b_pad):
    """BN1 (scale/shift folded in-kernel from all-tile stats) -> ReLU ->
    h2 = r1 @ W2 (+ BN2 partial stats).

    stats1_ref holds the full (n_tiles, 2, D_H1) partials (constant index_map,
    VMEM-resident).  The tiny reduce + rsqrt per step is hidden under the
    DMA-bound main loop and removes the standalone XLA glue between stages.
    Padded batch rows are zeroed *before* the matmul so they contribute nothing
    to the BN2 statistics.
    """
    inv_n = 1.0 / b_real
    tot = jnp.sum(stats1_ref[...], axis=0)                 # (2, D_H1)
    mean = tot[0:1, :] * inv_n
    var = jnp.maximum(tot[1:2, :] * inv_n - mean * mean, 0.0)
    scale = g1_ref[...] * jax.lax.rsqrt(var + EPS)
    shift = be1_ref[...] - scale * mean

    h1 = h1_ref[...].astype(jnp.float32)
    r1 = jnp.maximum(h1 * scale + shift, 0.0)
    if b_real != b_pad:  # static branch: only emitted when batch was padded
        row = (pl.program_id(0) * tile_b
               + jax.lax.broadcasted_iota(jnp.int32, (tile_b, 1), 0))
        r1 = jnp.where(row < b_real, r1, 0.0)

    h2 = jnp.dot(r1.astype(w2_ref.dtype), w2_ref[...],
                 preferred_element_type=jnp.float32)
    h2_ref[...] = h2.astype(h2_ref.dtype)
    stats2_ref[0] = jnp.concatenate(
        [jnp.sum(h2, axis=0, keepdims=True),
         jnp.sum(h2 * h2, axis=0, keepdims=True)], axis=0)


def _layer3_kernel(h2_ref, stats2_ref, g2_ref, be2_ref, w3_ref, b3_ref,
                   out_ref, *, b_real):
    """BN2 (folded from all-tile stats) -> ReLU -> logits @ W3 + b3 -> log_softmax.

    Padded classes carry a -1e30 bias so they never affect max / logsumexp.
    Padded rows produce garbage log-probs and are sliced off in the wrapper.
    """
    inv_n = 1.0 / b_real
    tot = jnp.sum(stats2_ref[...], axis=0)                 # (2, D_H2P)
    mean = tot[0:1, :] * inv_n
    var = jnp.maximum(tot[1:2, :] * inv_n - mean * mean, 0.0)
    scale = g2_ref[...] * jax.lax.rsqrt(var + EPS)         # padded feats: 0
    shift = be2_ref[...] - scale * mean

    h2 = h2_ref[...].astype(jnp.float32)
    r2 = jnp.maximum(h2 * scale + shift, 0.0)
    logits = jnp.dot(r2.astype(w3_ref.dtype), w3_ref[...],
                     preferred_element_type=jnp.float32) + b3_ref[...]
    m = jnp.max(logits, axis=1, keepdims=True)
    shifted = logits - m
    lse = jnp.log(jnp.sum(jnp.exp(shifted), axis=1, keepdims=True))
    out_ref[...] = shifted - lse


# ------------------------------ wrapper ----------------------------------------

def prepare_params(params):
    """One-time parameter prep (hoisted out of the per-call jitted graph):
    bf16 matmul weights, 124->128 / 10->128 zero padding, -1e30 pad-class bias.
    b1/b2 intentionally unused: Linear bias + training-mode BatchNorm cancels."""
    w1 = params["w1"].astype(jnp.bfloat16)
    g1 = params["g1"].reshape(1, D_H1).astype(jnp.float32)
    be1 = params["be1"].reshape(1, D_H1).astype(jnp.float32)
    w2p = jnp.zeros((D_H1, D_H2P), jnp.bfloat16).at[:, :D_H2].set(
        params["w2"].astype(jnp.bfloat16))
    g2p = jnp.zeros((1, D_H2P), jnp.float32).at[:, :D_H2].set(
        params["g2"].reshape(1, D_H2))
    be2p = jnp.zeros((1, D_H2P), jnp.float32).at[:, :D_H2].set(
        params["be2"].reshape(1, D_H2))
    w3p = jnp.zeros((D_H2P, D_OUTP), jnp.bfloat16).at[:D_H2, :D_OUT].set(
        params["w3"].astype(jnp.bfloat16))
    b3p = jnp.full((1, D_OUTP), NEG_INF, jnp.float32).at[:, :D_OUT].set(
        params["b3"].reshape(1, D_OUT))
    return {"w1": w1, "g1": g1, "be1": be1, "w2p": w2p, "g2p": g2p,
            "be2p": be2p, "w3p": w3p, "b3p": b3p}


@functools.partial(jax.jit, static_argnames=("tile_b",))
def mnist_mlp_forward(x, prep, tile_b=DEFAULT_TILE_B):
    """x: (B, 1, 28, 28) or (B, 784) float -> (B, 10) log-probabilities.
    prep: output of prepare_params()."""
    x2d = x.reshape(-1, D_IN).astype(jnp.float32)
    b_real = x2d.shape[0]
    tb = min(tile_b, MAX_TILE_B, _round_up(b_real, 8))
    b_pad = _round_up(b_real, tb)
    n_tiles = b_pad // tb

    x_bf = x2d.astype(jnp.bfloat16)
    if b_pad != b_real:
        x_bf = jnp.zeros((b_pad, D_IN), jnp.bfloat16).at[:b_real].set(x_bf)

    const2 = lambda i: (0, 0)       # VMEM-resident weights / BN vectors
    row_map = lambda i: (i, 0)      # streamed batch tiles
    const3 = lambda i: (0, 0, 0)    # full stats array, VMEM-resident
    stat_map = lambda i: (i, 0, 0)  # per-tile BN partial sums

    if n_tiles == 1:
        # -------- fused fast path: whole batch in one kernel, no HBM h1/h2 ----
        out_padded = pl.pallas_call(
            functools.partial(_fused_kernel, b_real=b_real, b_pad=b_pad),
            grid=(1,),
            in_specs=[pl.BlockSpec((b_pad, D_IN), const2),
                      pl.BlockSpec((D_IN, D_H1), const2),
                      pl.BlockSpec((1, D_H1), const2),
                      pl.BlockSpec((1, D_H1), const2),
                      pl.BlockSpec((D_H1, D_H2P), const2),
                      pl.BlockSpec((1, D_H2P), const2),
                      pl.BlockSpec((1, D_H2P), const2),
                      pl.BlockSpec((D_H2P, D_OUTP), const2),
                      pl.BlockSpec((1, D_OUTP), const2)],
            out_specs=pl.BlockSpec((b_pad, D_OUTP), const2),
            out_shape=jax.ShapeDtypeStruct((b_pad, D_OUTP), jnp.float32),
        )(x_bf, prep["w1"], prep["g1"], prep["be1"], prep["w2p"],
          prep["g2p"], prep["be2p"], prep["w3p"], prep["b3p"])
        return out_padded[:b_real, :D_OUT]

    # -------- multi-tile path: three batch-tiled stages, stats folded in-kernel ----
    parallel = pltpu.CompilerParams(dimension_semantics=("parallel",))

    # stage 1: h1 = x @ W1 (+ BN1 partial stats)
    h1, stats1 = pl.pallas_call(
        _layer1_kernel,
        grid=(n_tiles,),
        in_specs=[pl.BlockSpec((tb, D_IN), row_map),
                  pl.BlockSpec((D_IN, D_H1), const2)],
        out_specs=(pl.BlockSpec((tb, D_H1), row_map),
                   pl.BlockSpec((1, 2, D_H1), stat_map)),
        out_shape=(jax.ShapeDtypeStruct((b_pad, D_H1), jnp.bfloat16),
                   jax.ShapeDtypeStruct((n_tiles, 2, D_H1), jnp.float32)),
        compiler_params=parallel,
    )(x_bf, prep["w1"])

    # stage 2: BN1 -> ReLU -> h2 = r1 @ W2 (+ BN2 partial stats)
    h2, stats2 = pl.pallas_call(
        functools.partial(_layer2_kernel, tile_b=tb, b_real=b_real, b_pad=b_pad),
        grid=(n_tiles,),
        in_specs=[pl.BlockSpec((tb, D_H1), row_map),
                  pl.BlockSpec((n_tiles, 2, D_H1), const3),
                  pl.BlockSpec((1, D_H1), const2),
                  pl.BlockSpec((1, D_H1), const2),
                  pl.BlockSpec((D_H1, D_H2P), const2)],
        out_specs=(pl.BlockSpec((tb, D_H2P), row_map),
                   pl.BlockSpec((1, 2, D_H2P), stat_map)),
        out_shape=(jax.ShapeDtypeStruct((b_pad, D_H2P), jnp.bfloat16),
                   jax.ShapeDtypeStruct((n_tiles, 2, D_H2P), jnp.float32)),
        compiler_params=parallel,
    )(h1, stats1, prep["g1"], prep["be1"], prep["w2p"])

    # stage 3: BN2 -> ReLU -> logits @ W3 + b3 -> log_softmax
    out_padded = pl.pallas_call(
        functools.partial(_layer3_kernel, b_real=b_real),
        grid=(n_tiles,),
        in_specs=[pl.BlockSpec((tb, D_H2P), row_map),
                  pl.BlockSpec((n_tiles, 2, D_H2P), const3),
                  pl.BlockSpec((1, D_H2P), const2),
                  pl.BlockSpec((1, D_H2P), const2),
                  pl.BlockSpec((D_H2P, D_OUTP), const2),
                  pl.BlockSpec((1, D_OUTP), const2)],
        out_specs=pl.BlockSpec((tb, D_OUTP), row_map),
        out_shape=jax.ShapeDtypeStruct((b_pad, D_OUTP), jnp.float32),
        compiler_params=parallel,
    )(h2, stats2, prep["g2p"], prep["be2p"], prep["w3p"], prep["b3p"])

    return out_padded[:b_real, :D_OUT]


# ----------------------- reference / init / demo -------------------------------

def _reference_forward(x, params):
    """Pure-JAX f32 reference matching the PyTorch module (training-mode BN)."""
    x2d = x.reshape(-1, D_IN).astype(jnp.float32)
    h1 = x2d @ params["w1"] + params["b1"]
    mean1 = jnp.mean(h1, axis=0)
    var1 = jnp.mean((h1 - mean1) ** 2, axis=0)
    r1 = jax.nn.relu(params["g1"] * (h1 - mean1) * jax.lax.rsqrt(var1 + EPS)
                     + params["be1"])
    h2 = r1 @ params["w2"] + params["b2"]
    mean2 = jnp.mean(h2, axis=0)
    var2 = jnp.mean((h2 - mean2) ** 2, axis=0)
    r2 = jax.nn.relu(params["g2"] * (h2 - mean2) * jax.lax.rsqrt(var2 + EPS)
                     + params["be2"])
    logits = r2 @ params["w3"] + params["b3"]
    return jax.nn.log_softmax(logits, axis=1)


def init_params(key):
    """PyTorch-like defaults: Linear U[-1/sqrt(fan_in), +], BN gamma=1, beta=0."""
    def linear(k, fan_in, fan_out):
        kw, kb = jax.random.split(k)
        bound = 1.0 / (fan_in ** 0.5)
        w = jax.random.uniform(kw, (fan_in, fan_out), jnp.float32, -bound, bound)
        b = jax.random.uniform(kb, (1, fan_out), jnp.float32, -bound, bound)
        return w, b

    k1, k2, k3 = jax.random.split(key, 3)
    w1, b1 = linear(k1, D_IN, D_H1)
    w2, b2 = linear(k2, D_H1, D_H2)
    w3, b3 = linear(k3, D_H2, D_OUT)
    return {
        "w1": w1, "b1": b1,
        "g1": jnp.ones((1, D_H1), jnp.float32), "be1": jnp.zeros((1, D_H1), jnp.float32),
        "w2": w2, "b2": b2,
        "g2": jnp.ones((1, D_H2), jnp.float32), "be2": jnp.zeros((1, D_H2), jnp.float32),
        "w3": w3, "b3": b3,
    }


if __name__ == "__main__":
    key = jax.random.PRNGKey(0)
    kp, kx, kx2 = jax.random.split(key, 3)
    params = init_params(kp)
    prep = prepare_params(params)   # one-time parameter prep (hoisted)

    # --- fused single-call path (batch fits in one tile) ---
    x = jax.random.normal(kx, (8, 1, 28, 28), jnp.float32)
    out = jax.block_until_ready(mnist_mlp_forward(x, prep))
    assert out.shape == (8, 10)
    assert jnp.allclose(jax.nn.logsumexp(out, axis=1), 0.0, atol=1e-3)
    ref = _reference_forward(x, params)
    max_err = float(jnp.max(jnp.abs(out - ref)))
    assert max_err < 0.35, f"fused path mismatch vs f32 reference: {max_err}"

    # --- multi-tile path (forced small tile to exercise the grid + stats fold) ---
    x2 = jax.random.normal(kx2, (40, 1, 28, 28), jnp.float32)
    out2 = jax.block_until_ready(mnist_mlp_forward(x2, prep, tile_b=16))
    assert out2.shape == (40, 10)
    assert jnp.allclose(jax.nn.logsumexp(out2, axis=1), 0.0, atol=1e-3)
    ref2 = _reference_forward(x2, params)
    max_err2 = float(jnp.max(jnp.abs(out2 - ref2)))
    assert max_err2 < 0.35, f"multi-tile path mismatch vs f32 reference: {max_err2}"

    print("KERNEL_OK")
</pallas_src>

<mosaic_0001>
module attributes {stable_mosaic.version = 11 : i64} {
  func.func @_fused_kernel(%arg0: i32, %arg1: memref<8x784xbf16, #tpu.memory_space<vmem>>, %arg2: memref<784x256xbf16, #tpu.memory_space<vmem>>, %arg3: memref<1x256xf32, #tpu.memory_space<vmem>>, %arg4: memref<1x256xf32, #tpu.memory_space<vmem>>, %arg5: memref<256x128xbf16, #tpu.memory_space<vmem>>, %arg6: memref<1x128xf32, #tpu.memory_space<vmem>>, %arg7: memref<1x128xf32, #tpu.memory_space<vmem>>, %arg8: memref<128x128xbf16, #tpu.memory_space<vmem>>, %arg9: memref<1x128xf32, #tpu.memory_space<vmem>>, %arg10: memref<8x128xf32, #tpu.memory_space<vmem>>) attributes {dimension_semantics = [#tpu.dimension_semantics<arbitrary>], iteration_bounds = array<i64: 1>, scalar_prefetch = 0 : i64, scratch_operands = 0 : i64, tpu.core_type = #tpu.core_type<tc>, window_params = [{pipeline_mode = #tpu.pipeline_mode<synchronous>, transform_indices = @transform_0, window_bounds = array<i64: 8, 784>}, {pipeline_mode = #tpu.pipeline_mode<synchronous>, transform_indices = @transform_1, window_bounds = array<i64: 784, 256>}, {pipeline_mode = #tpu.pipeline_mode<synchronous>, transform_indices = @transform_2, window_bounds = array<i64: 1, 256>}, {pipeline_mode = #tpu.pipeline_mode<synchronous>, transform_indices = @transform_3, window_bounds = array<i64: 1, 256>}, {pipeline_mode = #tpu.pipeline_mode<synchronous>, transform_indices = @transform_4, window_bounds = array<i64: 256, 128>}, {pipeline_mode = #tpu.pipeline_mode<synchronous>, transform_indices = @transform_5, window_bounds = array<i64: 1, 128>}, {pipeline_mode = #tpu.pipeline_mode<synchronous>, transform_indices = @transform_6, window_bounds = array<i64: 1, 128>}, {pipeline_mode = #tpu.pipeline_mode<synchronous>, transform_indices = @transform_7, window_bounds = array<i64: 128, 128>}, {pipeline_mode = #tpu.pipeline_mode<synchronous>, transform_indices = @transform_8, window_bounds = array<i64: 1, 128>}, {pipeline_mode = #tpu.pipeline_mode<synchronous>, transform_indices = @transform_9, window_bounds = array<i64: 8, 128>}]} {
    %c0 = arith.constant 0 : index
    %c0_0 = arith.constant 0 : index
    %0 = vector.load %arg1[%c0, %c0_0] : memref<8x784xbf16, #tpu.memory_space<vmem>>, vector<8x784xbf16>
    %c0_1 = arith.constant 0 : index
    %c0_2 = arith.constant 0 : index
    %1 = vector.load %arg2[%c0_1, %c0_2] : memref<784x256xbf16, #tpu.memory_space<vmem>>, vector<784x256xbf16>
    %cst = arith.constant dense<0.000000e+00> : vector<8x256xf32>
    %2 = tpu.matmul %0, %1, %cst {dimension_numbers = #tpu.dot_dimension_numbers<[1], [0], [0], [1], [0, 0, 1, 1], [], []>} : vector<8x784xbf16>, vector<784x256xbf16>, vector<8x256xf32> -> vector<8x256xf32>
    %cst_3 = arith.constant dense<0.000000e+00> : vector<256xf32>
    %3 = vector.multi_reduction <add>, %2, %cst_3 [0] : vector<8x256xf32> to vector<256xf32>
    %4 = vector.shape_cast %3 : vector<256xf32> to vector<1x256xf32>
    %cst_4 = arith.constant 1.250000e-01 : f32
    %5 = vector.broadcast %cst_4 : f32 to vector<1x256xf32>
    %6 = arith.mulf %4, %5 : vector<1x256xf32>
    %7 = arith.mulf %2, %2 : vector<8x256xf32>
    %cst_5 = arith.constant dense<0.000000e+00> : vector<256xf32>
    %8 = vector.multi_reduction <add>, %7, %cst_5 [0] : vector<8x256xf32> to vector<256xf32>
    %9 = vector.shape_cast %8 : vector<256xf32> to vector<1x256xf32>
    %cst_6 = arith.constant 1.250000e-01 : f32
    %10 = vector.broadcast %cst_6 : f32 to vector<1x256xf32>
    %11 = arith.mulf %9, %10 : vector<1x256xf32>
    %12 = arith.mulf %6, %6 : vector<1x256xf32>
    %13 = arith.subf %11, %12 : vector<1x256xf32>
    %cst_7 = arith.constant 0.000000e+00 : f32
    %14 = vector.broadcast %cst_7 : f32 to vector<1x256xf32>
    %15 = arith.maximumf %13, %14 : vector<1x256xf32>
    %c0_8 = arith.constant 0 : index
    %c0_9 = arith.constant 0 : index
    %16 = vector.load %arg3[%c0_8, %c0_9] : memref<1x256xf32, #tpu.memory_space<vmem>>, vector<1x256xf32>
    %cst_10 = arith.constant 9.99999974E-6 : f32
    %17 = vector.broadcast %cst_10 : f32 to vector<1x256xf32>
    %18 = arith.addf %15, %17 : vector<1x256xf32>
    %19 = math.rsqrt %18 : vector<1x256xf32>
    %20 = arith.mulf %16, %19 : vector<1x256xf32>
    %c0_11 = arith.constant 0 : index
    %c0_12 = arith.constant 0 : index
    %21 = vector.load %arg4[%c0_11, %c0_12] : memref<1x256xf32, #tpu.memory_space<vmem>>, vector<1x256xf32>
    %22 = arith.mulf %20, %6 : vector<1x256xf32>
    %23 = arith.subf %21, %22 : vector<1x256xf32>
    %24 = vector.broadcast %20 : vector<1x256xf32> to vector<8x256xf32>
    %25 = arith.mulf %2, %24 : vector<8x256xf32>
    %26 = vector.broadcast %23 : vector<1x256xf32> to vector<8x256xf32>
    %27 = arith.addf %25, %26 : vector<8x256xf32>
    %cst_13 = arith.constant 0.000000e+00 : f32
    %28 = vector.broadcast %cst_13 : f32 to vector<8x256xf32>
    %29 = arith.maximumf %27, %28 : vector<8x256xf32>
    %30 = arith.truncf %29 : vector<8x256xf32> to vector<8x256xbf16>
    %c0_14 = arith.constant 0 : index
    %c0_15 = arith.constant 0 : index
    %31 = vector.load %arg5[%c0_14, %c0_15] : memref<256x128xbf16, #tpu.memory_space<vmem>>, vector<256x128xbf16>
    %cst_16 = arith.constant dense<0.000000e+00> : vector<8x128xf32>
    %32 = tpu.matmul %30, %31, %cst_16 {dimension_numbers = #tpu.dot_dimension_numbers<[1], [0], [0], [1], [0, 0, 1, 1], [], []>} : vector<8x256xbf16>, vector<256x128xbf16>, vector<8x128xf32> -> vector<8x128xf32>
    %cst_17 = arith.constant dense<0.000000e+00> : vector<128xf32>
    %33 = vector.multi_reduction <add>, %32, %cst_17 [0] : vector<8x128xf32> to vector<128xf32>
    %34 = vector.shape_cast %33 : vector<128xf32> to vector<1x128xf32>
    %cst_18 = arith.constant 1.250000e-01 : f32
    %35 = vector.broadcast %cst_18 : f32 to vector<1x128xf32>
    %36 = arith.mulf %34, %35 : vector<1x128xf32>
    %37 = arith.mulf %32, %32 : vector<8x128xf32>
    %cst_19 = arith.constant dense<0.000000e+00> : vector<128xf32>
    %38 = vector.multi_reduction <add>, %37, %cst_19 [0] : vector<8x128xf32> to vector<128xf32>
    %39 = vector.shape_cast %38 : vector<128xf32> to vector<1x128xf32>
    %cst_20 = arith.constant 1.250000e-01 : f32
    %40 = vector.broadcast %cst_20 : f32 to vector<1x128xf32>
    %41 = arith.mulf %39, %40 : vector<1x128xf32>
    %42 = arith.mulf %36, %36 : vector<1x128xf32>
    %43 = arith.subf %41, %42 : vector<1x128xf32>
    %cst_21 = arith.constant 0.000000e+00 : f32
    %44 = vector.broadcast %cst_21 : f32 to vector<1x128xf32>
    %45 = arith.maximumf %43, %44 : vector<1x128xf32>
    %c0_22 = arith.constant 0 : index
    %c0_23 = arith.constant 0 : index
    %46 = vector.load %arg6[%c0_22, %c0_23] : memref<1x128xf32, #tpu.memory_space<vmem>>, vector<1x128xf32>
    %cst_24 = arith.constant 9.99999974E-6 : f32
    %47 = vector.broadcast %cst_24 : f32 to vector<1x128xf32>
    %48 = arith.addf %45, %47 : vector<1x128xf32>
    %49 = math.rsqrt %48 : vector<1x128xf32>
    %50 = arith.mulf %46, %49 : vector<1x128xf32>
    %c0_25 = arith.constant 0 : index
    %c0_26 = arith.constant 0 : index
    %51 = vector.load %arg7[%c0_25, %c0_26] : memref<1x128xf32, #tpu.memory_space<vmem>>, vector<1x128xf32>
    %52 = arith.mulf %50, %36 : vector<1x128xf32>
    %53 = arith.subf %51, %52 : vector<1x128xf32>
    %54 = vector.broadcast %50 : vector<1x128xf32> to vector<8x128xf32>
    %55 = arith.mulf %32, %54 : vector<8x128xf32>
    %56 = vector.broadcast %53 : vector<1x128xf32> to vector<8x128xf32>
    %57 = arith.addf %55, %56 : vector<8x128xf32>
    %cst_27 = arith.constant 0.000000e+00 : f32
    %58 = vector.broadcast %cst_27 : f32 to vector<8x128xf32>
    %59 = arith.maximumf %57, %58 : vector<8x128xf32>
    %60 = arith.truncf %59 : vector<8x128xf32> to vector<8x128xbf16>
    %c0_28 = arith.constant 0 : index
    %c0_29 = arith.constant 0 : index
    %61 = vector.load %arg8[%c0_28, %c0_29] : memref<128x128xbf16, #tpu.memory_space<vmem>>, vector<128x128xbf16>
    %cst_30 = arith.constant dense<0.000000e+00> : vector<8x128xf32>
    %62 = tpu.matmul %60, %61, %cst_30 {dimension_numbers = #tpu.dot_dimension_numbers<[1], [0], [0], [1], [0, 0, 1, 1], [], []>} : vector<8x128xbf16>, vector<128x128xbf16>, vector<8x128xf32> -> vector<8x128xf32>
    %c0_31 = arith.constant 0 : index
    %c0_32 = arith.constant 0 : index
    %63 = vector.load %arg9[%c0_31, %c0_32] : memref<1x128xf32, #tpu.memory_space<vmem>>, vector<1x128xf32>
    %64 = vector.broadcast %63 : vector<1x128xf32> to vector<8x128xf32>
    %65 = arith.addf %62, %64 : vector<8x128xf32>
    %cst_33 = arith.constant dense<0xFF800000> : vector<8xf32>
    %66 = vector.multi_reduction <maximumf>, %65, %cst_33 [1] : vector<8x128xf32> to vector<8xf32>
    %67 = vector.shape_cast %66 : vector<8xf32> to vector<8x1xf32>
    %68 = vector.broadcast %67 : vector<8x1xf32> to vector<8x128xf32>
    %69 = arith.subf %65, %68 : vector<8x128xf32>
    %70 = math.exp %69 : vector<8x128xf32>
    %cst_34 = arith.constant dense<0.000000e+00> : vector<8xf32>
    %71 = vector.multi_reduction <add>, %70, %cst_34 [1] : vector<8x128xf32> to vector<8xf32>
    %72 = vector.shape_cast %71 : vector<8xf32> to vector<8x1xf32>
    %73 = math.log %72 : vector<8x1xf32>
    %74 = vector.broadcast %73 : vector<8x1xf32> to vector<8x128xf32>
    %75 = arith.subf %69, %74 : vector<8x128xf32>
    %c0_35 = arith.constant 0 : index
    %c0_36 = arith.constant 0 : index
    %76 = vector.load %arg10[%c0_35, %c0_36] : memref<8x128xf32, #tpu.memory_space<vmem>>, vector<8x128xf32>
    tpu.vector_store %arg10[%c0_35, %c0_36], %75 {strides = array<i32>} : memref<8x128xf32, #tpu.memory_space<vmem>>, vector<8x128xf32>,
    return
  }
  func.func @transform_0(%arg0: i32) -> (i32, i32) {
    %c0_i32 = arith.constant 0 : i32
    %c0_i32_0 = arith.constant 0 : i32
    %c0_i32_1 = arith.constant 0 : i32
    return %c0_i32, %c0_i32_0 : i32, i32
  }
  func.func @transform_1(%arg0: i32) -> (i32, i32) {
    %c0_i32 = arith.constant 0 : i32
    %c0_i32_0 = arith.constant 0 : i32
    %c0_i32_1 = arith.constant 0 : i32
    return %c0_i32, %c0_i32_0 : i32, i32
  }
  func.func @transform_2(%arg0: i32) -> (i32, i32) {
    %c0_i32 = arith.constant 0 : i32
    %c0_i32_0 = arith.constant 0 : i32
    %c0_i32_1 = arith.constant 0 : i32
    return %c0_i32, %c0_i32_0 : i32, i32
  }
  func.func @transform_3(%arg0: i32) -> (i32, i32) {
    %c0_i32 = arith.constant 0 : i32
    %c0_i32_0 = arith.constant 0 : i32
    %c0_i32_1 = arith.constant 0 : i32
    return %c0_i32, %c0_i32_0 : i32, i32
  }
  func.func @transform_4(%arg0: i32) -> (i32, i32) {
    %c0_i32 = arith.constant 0 : i32
    %c0_i32_0 = arith.constant 0 : i32
    %c0_i32_1 = arith.constant 0 : i32
    return %c0_i32, %c0_i32_0 : i32, i32
  }
  func.func @transform_5(%arg0: i32) -> (i32, i32) {
    %c0_i32 = arith.constant 0 : i32
    %c0_i32_0 = arith.constant 0 : i32
    %c0_i32_1 = arith.constant 0 : i32
    return %c0_i32, %c0_i32_0 : i32, i32
  }
  func.func @transform_6(%arg0: i32) -> (i32, i32) {
    %c0_i32 = arith.constant 0 : i32
    %c0_i32_0 = arith.constant 0 : i32
    %c0_i32_1 = arith.constant 0 : i32
    return %c0_i32, %c0_i32_0 : i32, i32
  }
  func.func @transform_7(%arg0: i32) -> (i32, i32) {
    %c0_i32 = arith.constant 0 : i32
    %c0_i32_0 = arith.constant 0 : i32
    %c0_i32_1 = arith.constant 0 : i32
    return %c0_i32, %c0_i32_0 : i32, i32
  }
  func.func @transform_8(%arg0: i32) -> (i32, i32) {
    %c0_i32 = arith.constant 0 : i32
    %c0_i32_0 = arith.constant 0 : i32
    %c0_i32_1 = arith.constant 0 : i32
    return %c0_i32, %c0_i32_0 : i32, i32
  }
  func.func @transform_9(%arg0: i32) -> (i32, i32) {
    %c0_i32 = arith.constant 0 : i32
    %c0_i32_0 = arith.constant 0 : i32
    %c0_i32_1 = arith.constant 0 : i32
    return %c0_i32, %c0_i32_0 : i32, i32
  }
}

</mosaic_0001>

<llo_original>
// kernel: mnist_mlp_forward.1
$region0: #{mnist_mlp_forward.1}
  #allocation0 [shape = 'u32[]', space=smem, size = 0x4, offset = 0x4, fixed_abs, tag = 'smem constant byte address 0x4 - core index']
  #allocation1 [shape = 'u32[144,128]{1,0:T(1,128)}', space=vmem, size = 0x12000, scoped, tag = 'internal scratch']
  %s0 = inlined_call_operand.vmem [shape: bf16[8,784], index: 0, kind: input, shape index: {}]
  %s1 = inlined_call_operand.hbm [shape: bf16[784,256], index: 1, kind: input, shape index: {}]
  %s2 = inlined_call_operand.vmem [shape: f32[1,256], index: 2, kind: input, shape index: {}]
  %s3 = inlined_call_operand.vmem [shape: f32[1,256], index: 3, kind: input, shape index: {}]
  %s4 = inlined_call_operand.vmem [shape: bf16[256,128], index: 4, kind: input, shape index: {}]
  %s5 = inlined_call_operand.vmem [shape: f32[1,128], index: 5, kind: input, shape index: {}]
  %s6 = inlined_call_operand.vmem [shape: f32[1,128], index: 6, kind: input, shape index: {}]
  %s7 = inlined_call_operand.vmem [shape: bf16[128,128], index: 7, kind: input, shape index: {}]
  %s8 = inlined_call_operand.vmem [shape: f32[1,128], index: 8, kind: input, shape index: {}]
  %s9 = inlined_call_operand.hbm [shape: f32[8,128], index: 9, kind: output, shape index: {}]
  %s10 = sld [smem:[#allocation0]]
  $region50: #{mnist_mlp_forward.1} parent=0
    _
  %s12 = ssub.s32 1, %s10
  %s13 = scalar_select 0, %s12, %s10
  $region1: #{mnist_mlp_forward.1} parent=0
    #allocation2 [shape = 'u8[401408]{0}', space=vmem, size = 0x62000, scoped, tag = 'input window, operand 1, single buffered']
    #allocation3 [shape = 's32[1]{0}', space=sflag, size = 0x4, scoped, tag = 'scoped memory for mnist_mlp_forward.1']
    #allocation4 [shape = 's32[1]{0}', space=sflag, size = 0x4, scoped, tag = 'scoped memory for mnist_mlp_forward.1']
    #allocation5 [shape = 'u8[4096]{0}', space=vmem, size = 0x1000, scoped, tag = 'output window, operand 0, single buffered']
    %14 = vsyncpa [#allocation3], 0
    %15 = vsyncpa [#allocation4], 0
    // Predicated region
    $region2: #{mnist_mlp_forward.1} parent=1 // pred_check
      _
    $region3: #{mnist_mlp_forward.1} parent=1 // pred_check_branch
      %17 = sbr.rel (0) target = $region5
    $region4: #{mnist_mlp_forward.1} parent=1 // pred_region
      _
    $region5: #{mnist_mlp_forward.1} parent=1 // pred_fallthru
      _
    // Predicated region
    $region6: #{mnist_mlp_forward.1} parent=1 // pred_check
      _
    $region7: #{mnist_mlp_forward.1} parent=1 // pred_check_branch
      %19 = sbr.rel (0) target = $region9
    $region8: #{mnist_mlp_forward.1} parent=1 // pred_region
      %s21 = ssub.s32 12544, 12544
      %22 = vsyncadd [#allocation3], %s21
      %s23 = sshll.u32 [#allocation2], 4
      %s24 = int_to_ptr.vmem [resolvable:$true] %s23
      %29 = dma.hbm_to_vmem [thread:$0]  %s1, 12544, %s24, [#allocation3], 128, 128, 8
    $region9: #{mnist_mlp_forward.1} parent=1 // pred_fallthru
      _
    // Predicated region
    $region10: #{mnist_mlp_forward.1} parent=1 // pred_check
      _
    $region11: #{mnist_mlp_forward.1} parent=1 // pred_check_branch
      %31 = sbr.rel (0) target = $region13
    $region12: #{mnist_mlp_forward.1} parent=1 // pred_region
      _
    $region13: #{mnist_mlp_forward.1} parent=1 // pred_fallthru
      _
    // Predicated region
    $region14: #{mnist_mlp_forward.1} parent=1 // pred_check
      _
    $region15: #{mnist_mlp_forward.1} parent=1 // pred_check_branch
      %33 = sbr.rel (0) target = $region17
    $region16: #{mnist_mlp_forward.1} parent=1 // pred_region
      _
    $region17: #{mnist_mlp_forward.1} parent=1 // pred_fallthru
      _
    // Predicated region
    $region18: #{mnist_mlp_forward.1} parent=1 // pred_check
      _
    $region19: #{mnist_mlp_forward.1} parent=1 // pred_check_branch
      %35 = sbr.rel (0) target = $region21
    $region20: #{mnist_mlp_forward.1} parent=1 // pred_region
      _
    $region21: #{mnist_mlp_forward.1} parent=1 // pred_fallthru
      _
    // Predicated region
    $region22: #{mnist_mlp_forward.1} parent=1 // pred_check
      _
    $region23: #{mnist_mlp_forward.1} parent=1 // pred_check_branch
      %37 = sbr.rel (0) target = $region25
    $region24: #{mnist_mlp_forward.1} parent=1 // pred_region
      _
    $region25: #{mnist_mlp_forward.1} parent=1 // pred_fallthru
      _
    // Predicated region
    $region26: #{mnist_mlp_forward.1} parent=1 // pred_check
      _
    $region27: #{mnist_mlp_forward.1} parent=1 // pred_check_branch
      %39 = sbr.rel (0) target = $region29
    $region28: #{mnist_mlp_forward.1} parent=1 // pred_region
      _
    $region29: #{mnist_mlp_forward.1} parent=1 // pred_fallthru
      _
    // Predicated region
    $region30: #{mnist_mlp_forward.1} parent=1 // pred_check
      _
    $region31: #{mnist_mlp_forward.1} parent=1 // pred_check_branch
      %41 = sbr.rel (0) target = $region33
    $region32: #{mnist_mlp_forward.1} parent=1 // pred_region
      _
    $region33: #{mnist_mlp_forward.1} parent=1 // pred_fallthru
      _
    // Predicated region
    $region34: #{mnist_mlp_forward.1} parent=1 // pred_check
      _
    $region35: #{mnist_mlp_forward.1} parent=1 // pred_check_branch
      %43 = sbr.rel (0) target = $region37
    $region36: #{mnist_mlp_forward.1} parent=1 // pred_region
      _
    $region37: #{mnist_mlp_forward.1} parent=1 // pred_fallthru
      _
    // Predicated region
    $region38: #{mnist_mlp_forward.1} parent=1 // pred_check
      _
    $region39: #{mnist_mlp_forward.1} parent=1 // pred_check_branch
      %45 = sbr.rel (0) target = $region41
    $region40: #{mnist_mlp_forward.1} parent=1 // pred_region
      %46 = dma.done [#allocation3], 12544
    $region41: #{mnist_mlp_forward.1} parent=1 // pred_fallthru
      _
    %v48 = vld [vmem:[%s0] sm:$0xff]
    %v49 = vld [vmem:[%s0 + $0x8] sm:$0xff]
    %v50 = vld [vmem:[%s0 + $0x10] sm:$0xff]
    %v51 = vld [vmem:[%s0 + $0x18] sm:$0xf]
    %v52 = vld [vmem:[#allocation2] sm:$0xff]
    %v53 = vld [vmem:[#allocation2 + $0x8] sm:$0xff]
    %v54 = vld [vmem:[#allocation2 + $0x10] sm:$0xff]
    %v55 = vld [vmem:[#allocation2 + $0x18] sm:$0xff]
    %v56 = vld [vmem:[#allocation2 + $0x20] sm:$0xff]
    %v57 = vld [vmem:[#allocation2 + $0x28] sm:$0xff]
    %v58 = vld [vmem:[#allocation2 + $0x30] sm:$0xff]
    %v59 = vld [vmem:[#allocation2 + $0x38] sm:$0xff]
    %v60 = vld [vmem:[#allocation2 + $0x40] sm:$0xff]
    %v61 = vld [vmem:[#allocation2 + $0x48] sm:$0xff]
    %v62 = vld [vmem:[#allocation2 + $0x50] sm:$0xff]
    %v63 = vld [vmem:[#allocation2 + $0x58] sm:$0xff]
    %v64 = vld [vmem:[#allocation2 + $0x60] sm:$0xff]
    %v65 = vld [vmem:[#allocation2 + $0x68] sm:$0xff]
    %v66 = vld [vmem:[#allocation2 + $0x70] sm:$0xff]
    %v67 = vld [vmem:[#allocation2 + $0x78] sm:$0xff]
    %v68 = vld [vmem:[#allocation2 + $0x80] sm:$0xff]
    %v69 = vld [vmem:[#allocation2 + $0x88] sm:$0xff]
    %v70 = vld [vmem:[#allocation2 + $0x90] sm:$0xff]
    %v71 = vld [vmem:[#allocation2 + $0x98] sm:$0xff]
    %v72 = vld [vmem:[#allocation2 + $0xa0] sm:$0xff]
    %v73 = vld [vmem:[#allocation2 + $0xa8] sm:$0xff]
    %v74 = vld [vmem:[#allocation2 + $0xb0] sm:$0xff]
    %v75 = vld [vmem:[#allocation2 + $0xb8] sm:$0xff]
    %v76 = vld [vmem:[#allocation2 + $0xc0] sm:$0xff]
    %v77 = vld [vmem:[#allocation2 + $0xc8] sm:$0xff]
    %v78 = vld [vmem:[#allocation2 + $0xd0] sm:$0xff]
    %v79 = vld [vmem:[#allocation2 + $0xd8] sm:$0xff]
    %v80 = vld [vmem:[#allocation2 + $0xe0] sm:$0xff]
    %v81 = vld [vmem:[#allocation2 + $0xe8] sm:$0xff]
    %v82 = vld [vmem:[#allocation2 + $0xf0] sm:$0xff]
    %v83 = vld [vmem:[#allocation2 + $0xf8] sm:$0xff]
    %v84 = vld [vmem:[#allocation2 + $0x100] sm:$0xff]
    %v85 = vld [vmem:[#allocation2 + $0x108] sm:$0xff]
    %v86 = vld [vmem:[#allocation2 + $0x110] sm:$0xff]
    %v87 = vld [vmem:[#allocation2 + $0x118] sm:$0xff]
    %v88 = vld [vmem:[#allocation2 + $0x120] sm:$0xff]
    %v89 = vld [vmem:[#allocation2 + $0x128] sm:$0xff]
    %v90 = vld [vmem:[#allocation2 + $0x130] sm:$0xff]
    %v91 = vld [vmem:[#allocation2 + $0x138] sm:$0xff]
    %v92 = vld [vmem:[#allocation2 + $0x140] sm:$0xff]
    %v93 = vld [vmem:[#allocation2 + $0x148] sm:$0xff]
    %v94 = vld [vmem:[#allocation2 + $0x150] sm:$0xff]
    %v95 = vld [vmem:[#allocation2 + $0x158] sm:$0xff]
    %v96 = vld [vmem:[#allocation2 + $0x160] sm:$0xff]
    %v97 = vld [vmem:[#allocation2 + $0x168] sm:$0xff]
    %v98 = vld [vmem:[#allocation2 + $0x170] sm:$0xff]
    %v99 = vld [vmem:[#allocation2 + $0x178] sm:$0xff]
    %v100 = vld [vmem:[#allocation2 + $0x180] sm:$0xff]
    %v101 = vld [vmem:[#allocation2 + $0x188] sm:$0xff]
    %v102 = vld [vmem:[#allocation2 + $0x190] sm:$0xff]
    %v103 = vld [vmem:[#allocation2 + $0x198] sm:$0xff]
    %v104 = vld [vmem:[#allocation2 + $0x1a0] sm:$0xff]
    %v105 = vld [vmem:[#allocation2 + $0x1a8] sm:$0xff]
    %v106 = vld [vmem:[#allocation2 + $0x1b0] sm:$0xff]
    %v107 = vld [vmem:[#allocation2 + $0x1b8] sm:$0xff]
    %v108 = vld [vmem:[#allocation2 + $0x1c0] sm:$0xff]
    %v109 = vld [vmem:[#allocation2 + $0x1c8] sm:$0xff]
    %v110 = vld [vmem:[#allocation2 + $0x1d0] sm:$0xff]
    %v111 = vld [vmem:[#allocation2 + $0x1d8] sm:$0xff]
    %v112 = vld [vmem:[#allocation2 + $0x1e0] sm:$0xff]
    %v113 = vld [vmem:[#allocation2 + $0x1e8] sm:$0xff]
    %v114 = vld [vmem:[#allocation2 + $0x1f0] sm:$0xff]
    %v115 = vld [vmem:[#allocation2 + $0x1f8] sm:$0xff]
    %v116 = vld [vmem:[#allocation2 + $0x200] sm:$0xff]
    %v117 = vld [vmem:[#allocation2 + $0x208] sm:$0xff]
    %v118 = vld [vmem:[#allocation2 + $0x210] sm:$0xff]
    %v119 = vld [vmem:[#allocation2 + $0x218] sm:$0xff]
    %v120 = vld [vmem:[#allocation2 + $0x220] sm:$0xff]
    %v121 = vld [vmem:[#allocation2 + $0x228] sm:$0xff]
    %v122 = vld [vmem:[#allocation2 + $0x230] sm:$0xff]
    %v123 = vld [vmem:[#allocation2 + $0x238] sm:$0xff]
    %v124 = vld [vmem:[#allocation2 + $0x240] sm:$0xff]
    %v125 = vld [vmem:[#allocation2 + $0x248] sm:$0xff]
    %v126 = vld [vmem:[#allocation2 + $0x250] sm:$0xff]
    %v127 = vld [vmem:[#allocation2 + $0x258] sm:$0xff]
    %v128 = vld [vmem:[#allocation2 + $0x260] sm:$0xff]
    %v129 = vld [vmem:[#allocation2 + $0x268] sm:$0xff]
    %v130 = vld [vmem:[#allocation2 + $0x270] sm:$0xff]
    %v131 = vld [vmem:[#allocation2 + $0x278] sm:$0xff]
    %v132 = vld [vmem:[#allocation2 + $0x280] sm:$0xff]
    %v133 = vld [vmem:[#allocation2 + $0x288] sm:$0xff]
    %v134 = vld [vmem:[#allocation2 + $0x290] sm:$0xff]
    %v135 = vld [vmem:[#allocation2 + $0x298] sm:$0xff]
    %v136 = vld [vmem:[#allocation2 + $0x2a0] sm:$0xff]
    %v137 = vld [vmem:[#allocation2 + $0x2a8] sm:$0xff]
    %v138 = vld [vmem:[#allocation2 + $0x2b0] sm:$0xff]
    %v139 = vld [vmem:[#allocation2 + $0x2b8] sm:$0xff]
    %v140 = vld [vmem:[#allocation2 + $0x2c0] sm:$0xff]
    %v141 = vld [vmem:[#allocation2 + $0x2c8] sm:$0xff]
    %v142 = vld [vmem:[#allocation2 + $0x2d0] sm:$0xff]
    %v143 = vld [vmem:[#allocation2 + $0x2d8] sm:$0xff]
    %v144 = vld [vmem:[#allocation2 + $0x2e0] sm:$0xff]
    %v145 = vld [vmem:[#allocation2 + $0x2e8] sm:$0xff]
    %v146 = vld [vmem:[#allocation2 + $0x2f0] sm:$0xff]
    %v147 = vld [vmem:[#allocation2 + $0x2f8] sm:$0xff]
    %v148 = vld [vmem:[#allocation2 + $0x300] sm:$0xff]
    %v149 = vld [vmem:[#allocation2 + $0x308] sm:$0xff]
    %v154 = vunpack.c.l.b16 %v48
    %v155 = vunpack.c.h.b16 %v48
    %v156 = vunpack.c.l.b16 %v49
    %v157 = vunpack.c.h.b16 %v49
    %v158 = vunpack.c.l.b16 %v50
    %v159 = vunpack.c.h.b16 %v50
    %v160 = vunpack.c.l.b16 %v51
    %v161 = vpack.c.b16 %v154, %v154
    %v162 = vpack.c.b16 %v155, %v155
    %v163 = vpack.c.b16 %v156, %v156
    %v164 = vpack.c.b16 %v157, %v157
    %v165 = vpack.c.b16 %v158, %v158
    %v166 = vpack.c.b16 %v159, %v159
    %v167 = vpack.c.b16 %v160, %v160
    %v272 = vunpack.c.l.b16 %v52
    %v273 = vunpack.c.h.b16 %v52
    %v274 = vunpack.c.l.b16 %v53
    %v275 = vunpack.c.h.b16 %v53
    %v276 = vunpack.c.l.b16 %v54
    %v277 = vunpack.c.h.b16 %v54
    %v278 = vunpack.c.l.b16 %v55
    %v279 = vunpack.c.h.b16 %v55
    %v280 = vunpack.c.l.b16 %v56
    %v281 = vunpack.c.h.b16 %v56
    %v282 = vunpack.c.l.b16 %v57
    %v283 = vunpack.c.h.b16 %v57
    %v284 = vunpack.c.l.b16 %v58
    %v285 = vunpack.c.h.b16 %v58
    %v286 = vunpack.c.l.b16 %v59
    %v287 = vunpack.c.h.b16 %v59
    %v288 = vunpack.c.l.b16 %v60
    %v289 = vunpack.c.h.b16 %v60
    %v290 = vunpack.c.l.b16 %v61
    %v291 = vunpack.c.h.b16 %v61
    %v292 = vunpack.c.l.b16 %v62
    %v293 = vunpack.c.h.b16 %v62
    %v294 = vunpack.c.l.b16 %v63
    %v295 = vunpack.c.h.b16 %v63
    %v296 = vunpack.c.l.b16 %v64
    %v297 = vunpack.c.h.b16 %v64
    %v298 = vunpack.c.l.b16 %v65
    %v299 = vunpack.c.h.b16 %v65
    %v300 = vunpack.c.l.b16 %v66
    %v301 = vunpack.c.h.b16 %v66
    %v302 = vunpack.c.l.b16 %v67
    %v303 = vunpack.c.h.b16 %v67
    %v304 = vunpack.c.l.b16 %v68
    %v305 = vunpack.c.h.b16 %v68
    %v306 = vunpack.c.l.b16 %v69
    %v307 = vunpack.c.h.b16 %v69
    %v308 = vunpack.c.l.b16 %v70
    %v309 = vunpack.c.h.b16 %v70
    %v310 = vunpack.c.l.b16 %v71
    %v311 = vunpack.c.h.b16 %v71
    %v312 = vunpack.c.l.b16 %v72
    %v313 = vunpack.c.h.b16 %v72
    %v314 = vunpack.c.l.b16 %v73
    %v315 = vunpack.c.h.b16 %v73
    %v316 = vunpack.c.l.b16 %v74
    %v317 = vunpack.c.h.b16 %v74
    %v318 = vunpack.c.l.b16 %v75
    %v319 = vunpack.c.h.b16 %v75
    %v320 = vunpack.c.l.b16 %v76
    %v321 = vunpack.c.h.b16 %v76
    %v322 = vunpack.c.l.b16 %v77
    %v323 = vunpack.c.h.b16 %v77
    %v324 = vunpack.c.l.b16 %v78
    %v325 = vunpack.c.h.b16 %v78
    %v326 = vunpack.c.l.b16 %v79
    %v327 = vunpack.c.h.b16 %v79
    %v328 = vunpack.c.l.b16 %v80
    %v329 = vunpack.c.h.b16 %v80
    %v330 = vunpack.c.l.b16 %v81
    %v331 = vunpack.c.h.b16 %v81
    %v332 = vunpack.c.l.b16 %v82
    %v333 = vunpack.c.h.b16 %v82
    %v334 = vunpack.c.l.b16 %v83
    %v335 = vunpack.c.h.b16 %v83
    %v336 = vunpack.c.l.b16 %v84
    %v337 = vunpack.c.h.b16 %v84
    %v338 = vunpack.c.l.b16 %v85
    %v339 = vunpack.c.h.b16 %v85
    %v340 = vunpack.c.l.b16 %v86
    %v341 = vunpack.c.h.b16 %v86
    %v342 = vunpack.c.l.b16 %v87
    %v343 = vunpack.c.h.b16 %v87
    %v344 = vunpack.c.l.b16 %v88
    %v345 = vunpack.c.h.b16 %v88
    %v346 = vunpack.c.l.b16 %v89
    %v347 = vunpack.c.h.b16 %v89
    %v348 = vunpack.c.l.b16 %v90
    %v349 = vunpack.c.h.b16 %v90
    %v350 = vunpack.c.l.b16 %v91
    %v351 = vunpack.c.h.b16 %v91
    %v352 = vunpack.c.l.b16 %v92
    %v353 = vunpack.c.h.b16 %v92
    %v354 = vunpack.c.l.b16 %v93
    %v355 = vunpack.c.h.b16 %v93
    %v356 = vunpack.c.l.b16 %v94
    %v357 = vunpack.c.h.b16 %v94
    %v358 = vunpack.c.l.b16 %v95
    %v359 = vunpack.c.h.b16 %v95
    %v360 = vunpack.c.l.b16 %v96
    %v361 = vunpack.c.h.b16 %v96
    %v362 = vunpack.c.l.b16 %v97
    %v363 = vunpack.c.h.b16 %v97
    %v364 = vunpack.c.l.b16 %v98
    %v365 = vunpack.c.h.b16 %v98
    %v366 = vunpack.c.l.b16 %v99
    %v367 = vunpack.c.h.b16 %v99
    %v368 = vunpack.c.l.b16 %v100
    %v369 = vunpack.c.h.b16 %v100
    %v370 = vunpack.c.l.b16 %v101
    %v371 = vunpack.c.h.b16 %v101
    %v372 = vunpack.c.l.b16 %v102
    %v373 = vunpack.c.h.b16 %v102
    %v374 = vunpack.c.l.b16 %v103
    %v375 = vunpack.c.h.b16 %v103
    %v376 = vunpack.c.l.b16 %v104
    %v377 = vunpack.c.h.b16 %v104
    %v378 = vunpack.c.l.b16 %v105
    %v379 = vunpack.c.h.b16 %v105
    %v380 = vunpack.c.l.b16 %v106
    %v381 = vunpack.c.h.b16 %v106
    %v382 = vunpack.c.l.b16 %v107
    %v383 = vunpack.c.h.b16 %v107
    %v384 = vunpack.c.l.b16 %v108
    %v385 = vunpack.c.h.b16 %v108
    %v386 = vunpack.c.l.b16 %v109
    %v387 = vunpack.c.h.b16 %v109
    %v388 = vunpack.c.l.b16 %v110
    %v389 = vunpack.c.h.b16 %v110
    %v390 = vunpack.c.l.b16 %v111
    %v391 = vunpack.c.h.b16 %v111
    %v392 = vunpack.c.l.b16 %v112
    %v393 = vunpack.c.h.b16 %v112
    %v394 = vunpack.c.l.b16 %v113
    %v395 = vunpack.c.h.b16 %v113
    %v396 = vunpack.c.l.b16 %v114
    %v397 = vunpack.c.h.b16 %v114
    %v398 = vunpack.c.l.b16 %v115
    %v399 = vunpack.c.h.b16 %v115
    %v400 = vunpack.c.l.b16 %v116
    %v401 = vunpack.c.h.b16 %v116
    %v402 = vunpack.c.l.b16 %v117
    %v403 = vunpack.c.h.b16 %v117
    %v404 = vunpack.c.l.b16 %v118
    %v405 = vunpack.c.h.b16 %v118
    %v406 = vunpack.c.l.b16 %v119
    %v407 = vunpack.c.h.b16 %v119
    %v408 = vunpack.c.l.b16 %v120
    %v409 = vunpack.c.h.b16 %v120
    %v410 = vunpack.c.l.b16 %v121
    %v411 = vunpack.c.h.b16 %v121
    %v412 = vunpack.c.l.b16 %v122
    %v413 = vunpack.c.h.b16 %v122
    %v414 = vunpack.c.l.b16 %v123
    %v415 = vunpack.c.h.b16 %v123
    %v416 = vunpack.c.l.b16 %v124
    %v417 = vunpack.c.h.b16 %v124
    %v418 = vunpack.c.l.b16 %v125
    %v419 = vunpack.c.h.b16 %v125
    %v420 = vunpack.c.l.b16 %v126
    %v421 = vunpack.c.h.b16 %v126
    %v422 = vunpack.c.l.b16 %v127
    %v423 = vunpack.c.h.b16 %v127
    %v424 = vunpack.c.l.b16 %v128
    %v425 = vunpack.c.h.b16 %v128
    %v426 = vunpack.c.l.b16 %v129
    %v427 = vunpack.c.h.b16 %v129
    %v428 = vunpack.c.l.b16 %v130
    %v429 = vunpack.c.h.b16 %v130
    %v430 = vunpack.c.l.b16 %v131
    %v431 = vunpack.c.h.b16 %v131
    %v432 = vunpack.c.l.b16 %v132
    %v433 = vunpack.c.h.b16 %v132
    %v434 = vunpack.c.l.b16 %v133
    %v435 = vunpack.c.h.b16 %v133
    %v436 = vunpack.c.l.b16 %v134
    %v437 = vunpack.c.h.b16 %v134
    %v438 = vunpack.c.l.b16 %v135
    %v439 = vunpack.c.h.b16 %v135
    %v440 = vunpack.c.l.b16 %v136
    %v441 = vunpack.c.h.b16 %v136
    %v442 = vunpack.c.l.b16 %v137
    %v443 = vunpack.c.h.b16 %v137
    %v444 = vunpack.c.l.b16 %v138
    %v445 = vunpack.c.h.b16 %v138
    %v446 = vunpack.c.l.b16 %v139
    %v447 = vunpack.c.h.b16 %v139
    %v448 = vunpack.c.l.b16 %v140
    %v449 = vunpack.c.h.b16 %v140
    %v450 = vunpack.c.l.b16 %v141
    %v451 = vunpack.c.h.b16 %v141
    %v452 = vunpack.c.l.b16 %v142
    %v453 = vunpack.c.h.b16 %v142
    %v454 = vunpack.c.l.b16 %v143
    %v455 = vunpack.c.h.b16 %v143
    %v456 = vunpack.c.l.b16 %v144
    %v457 = vunpack.c.h.b16 %v144
    %v458 = vunpack.c.l.b16 %v145
    %v459 = vunpack.c.h.b16 %v145
    %v460 = vunpack.c.l.b16 %v146
    %v461 = vunpack.c.h.b16 %v146
    %v462 = vunpack.c.l.b16 %v147
    %v463 = vunpack.c.h.b16 %v147
    %v464 = vunpack.c.l.b16 %v148
    %v465 = vunpack.c.h.b16 %v148
    %v466 = vunpack.c.l.b16 %v149
    %v467 = vunpack.c.h.b16 %v149
    %v468 = vpack.c.b16 %v274, %v272
    %v469 = vpack.c.b16 %v275, %v273
    %v470 = vpack.c.b16 %v278, %v276
    %v471 = vpack.c.b16 %v279, %v277
    %v472 = vpack.c.b16 %v282, %v280
    %v473 = vpack.c.b16 %v283, %v281
    %v474 = vpack.c.b16 %v286, %v284
    %v475 = vpack.c.b16 %v287, %v285
    %v476 = vpack.c.b16 %v290, %v288
    %v477 = vpack.c.b16 %v291, %v289
    %v478 = vpack.c.b16 %v294, %v292
    %v479 = vpack.c.b16 %v295, %v293
    %v480 = vpack.c.b16 %v298, %v296
    %v481 = vpack.c.b16 %v299, %v297
    %v482 = vpack.c.b16 %v302, %v300
    %v483 = vpack.c.b16 %v303, %v301
    %v484 = vpack.c.b16 %v306, %v304
    %v485 = vpack.c.b16 %v307, %v305
    %v486 = vpack.c.b16 %v310, %v308
    %v487 = vpack.c.b16 %v311, %v309
    %v488 = vpack.c.b16 %v314, %v312
    %v489 = vpack.c.b16 %v315, %v313
    %v490 = vpack.c.b16 %v318, %v316
    %v491 = vpack.c.b16 %v319, %v317
    %v492 = vpack.c.b16 %v322, %v320
    %v493 = vpack.c.b16 %v323, %v321
    %v494 = vpack.c.b16 %v326, %v324
    %v495 = vpack.c.b16 %v327, %v325
    %v496 = vpack.c.b16 %v330, %v328
    %v497 = vpack.c.b16 %v331, %v329
    %v498 = vpack.c.b16 %v334, %v332
    %v499 = vpack.c.b16 %v335, %v333
    %v500 = vpack.c.b16 %v338, %v336
    %v501 = vpack.c.b16 %v339, %v337
    %v502 = vpack.c.b16 %v342, %v340
    %v503 = vpack.c.b16 %v343, %v341
    %v504 = vpack.c.b16 %v346, %v344
    %v505 = vpack.c.b16 %v347, %v345
    %v506 = vpack.c.b16 %v350, %v348
    %v507 = vpack.c.b16 %v351, %v349
    %v508 = vpack.c.b16 %v354, %v352
    %v509 = vpack.c.b16 %v355, %v353
    %v510 = vpack.c.b16 %v358, %v356
    %v511 = vpack.c.b16 %v359, %v357
    %v512 = vpack.c.b16 %v362, %v360
    %v513 = vpack.c.b16 %v363, %v361
    %v514 = vpack.c.b16 %v366, %v364
    %v515 = vpack.c.b16 %v367, %v365
    %v516 = vpack.c.b16 %v370, %v368
    %v517 = vpack.c.b16 %v371, %v369
    %v518 = vpack.c.b16 %v374, %v372
    %v519 = vpack.c.b16 %v375, %v373
    %v520 = vpack.c.b16 %v378, %v376
    %v521 = vpack.c.b16 %v379, %v377
    %v522 = vpack.c.b16 %v382, %v380
    %v523 = vpack.c.b16 %v383, %v381
    %v524 = vpack.c.b16 %v386, %v384
    %v525 = vpack.c.b16 %v387, %v385
    %v526 = vpack.c.b16 %v390, %v388
    %v527 = vpack.c.b16 %v391, %v389
    %v528 = vpack.c.b16 %v394, %v392
    %v529 = vpack.c.b16 %v395, %v393
    %v530 = vpack.c.b16 %v398, %v396
    %v531 = vpack.c.b16 %v399, %v397
    %v532 = vpack.c.b16 %v402, %v400
    %v533 = vpack.c.b16 %v403, %v401
    %v534 = vpack.c.b16 %v406, %v404
    %v535 = vpack.c.b16 %v407, %v405
    %v536 = vpack.c.b16 %v410, %v408
    %v537 = vpack.c.b16 %v411, %v409
    %v538 = vpack.c.b16 %v414, %v412
    %v539 = vpack.c.b16 %v415, %v413
    %v540 = vpack.c.b16 %v418, %v416
    %v541 = vpack.c.b16 %v419, %v417
    %v542 = vpack.c.b16 %v422, %v420
    %v543 = vpack.c.b16 %v423, %v421
    %v544 = vpack.c.b16 %v426, %v424
    %v545 = vpack.c.b16 %v427, %v425
    %v546 = vpack.c.b16 %v430, %v428
    %v547 = vpack.c.b16 %v431, %v429
    %v548 = vpack.c.b16 %v434, %v432
    %v549 = vpack.c.b16 %v435, %v433
    %v550 = vpack.c.b16 %v438, %v436
    %v551 = vpack.c.b16 %v439, %v437
    %v552 = vpack.c.b16 %v442, %v440
    %v553 = vpack.c.b16 %v443, %v441
    %v554 = vpack.c.b16 %v446, %v444
    %v555 = vpack.c.b16 %v447, %v445
    %v556 = vpack.c.b16 %v450, %v448
    %v557 = vpack.c.b16 %v451, %v449
    %v558 = vpack.c.b16 %v454, %v452
    %v559 = vpack.c.b16 %v455, %v453
    %v560 = vpack.c.b16 %v458, %v456
    %v561 = vpack.c.b16 %v459, %v457
    %v562 = vpack.c.b16 %v462, %v460
    %v563 = vpack.c.b16 %v463, %v461
    %v564 = vpack.c.b16 %v466, %v464
    %v565 = vpack.c.b16 %v467, %v465
    %vm664 = vcmask 130048
    %v666 = vsel %vm664, %v167, 0
    %668 = vmatprep.subr.bf16.mxu0 %v469
    %669 = vmatpush1.bf16.msra.mxu0 %v468
    %670 = vmatprep.subr.bf16.mxu0 %v471
    %671 = vmatpush1.bf16.msra.mxu0 %v470
    %672 = vmatprep.subr.bf16.mxu0 %v473
    %673 = vmatpush1.bf16.msra.mxu0 %v472
    %674 = vmatprep.subr.bf16.mxu0 %v475
    %675 = vmatpush1.bf16.msra.mxu0 %v474
    %676 = vmatprep.subr.bf16.mxu0 %v477
    %677 = vmatpush1.bf16.msra.mxu0 %v476
    %678 = vmatprep.subr.bf16.mxu0 %v479
    %679 = vmatpush1.bf16.msra.mxu0 %v478
    %680 = vmatprep.subr.bf16.mxu0 %v481
    %681 = vmatpush1.bf16.msra.mxu0 %v480
    %682 = vmatprep.subr.bf16.mxu0 %v483
    %683 = vmatpush1.bf16.msra.mxu0 %v482
    %684 = vmatprep.subr.bf16.mxu0 %v485
    %685 = vmatpush1.bf16.msra.mxu0 %v484
    %686 = vmatprep.subr.bf16.mxu0 %v487
    %687 = vmatpush1.bf16.msra.mxu0 %v486
    %688 = vmatprep.subr.bf16.mxu0 %v489
    %689 = vmatpush1.bf16.msra.mxu0 %v488
    %690 = vmatprep.subr.bf16.mxu0 %v491
    %691 = vmatpush1.bf16.msra.mxu0 %v490
    %692 = vmatprep.subr.bf16.mxu0 %v493
    %693 = vmatpush1.bf16.msra.mxu0 %v492
    %694 = vmatprep.subr.bf16.mxu0 %v495
    %695 = vmatpush1.bf16.msra.mxu0 %v494
    %696 = vmatprep.subr.bf16.mxu0 %v497
    %697 = vmatpush1.bf16.msra.mxu0 %v496
    %698 = vmatprep.subr.bf16.mxu0 %v499
    %699 = vmatpush1.bf16.msra.mxu0 %v498
    %700 = vmatprep.mubr.bf16.mxu0 %v162
    %701 = vmatmul.mubr.bf16.gmra.mrb[0].mxu0 %v161
    %v702 = vpop.f32.mrb[0].mxu0
    %v703 = vadd.f32 0.0, %v702
    %v704 = vpop.f32.mrb[0].mxu0
    %v705 = vadd.f32 0.0, %v704
    %v706 = vpop.f32.mrb[0].mxu0
    %v707 = vpop.f32.mrb[0].mxu0
    %708 = vdwg.mxu0
    %709 = vmatprep.subr.bf16.mxu0 %v501
    %710 = vmatpush1.bf16.msra.mxu0 %v500
    %711 = vmatprep.subr.bf16.mxu0 %v503
    %712 = vmatpush1.bf16.msra.mxu0 %v502
    %713 = vmatprep.subr.bf16.mxu0 %v505
    %714 = vmatpush1.bf16.msra.mxu0 %v504
    %715 = vmatprep.subr.bf16.mxu0 %v507
    %716 = vmatpush1.bf16.msra.mxu0 %v506
    %717 = vmatprep.subr.bf16.mxu0 %v509
    %718 = vmatpush1.bf16.msra.mxu0 %v508
    %719 = vmatprep.subr.bf16.mxu0 %v511
    %720 = vmatpush1.bf16.msra.mxu0 %v510
    %721 = vmatprep.subr.bf16.mxu0 %v513
    %722 = vmatpush1.bf16.msra.mxu0 %v512
    %723 = vmatprep.subr.bf16.mxu0 %v515
    %724 = vmatpush1.bf16.msra.mxu0 %v514
    %725 = vmatprep.subr.bf16.mxu0 %v517
    %726 = vmatpush1.bf16.msra.mxu0 %v516
    %727 = vmatprep.subr.bf16.mxu0 %v519
    %728 = vmatpush1.bf16.msra.mxu0 %v518
    %729 = vmatprep.subr.bf16.mxu0 %v521
    %730 = vmatpush1.bf16.msra.mxu0 %v520
    %731 = vmatprep.subr.bf16.mxu0 %v523
    %732 = vmatpush1.bf16.msra.mxu0 %v522
    %733 = vmatprep.subr.bf16.mxu0 %v525
    %734 = vmatpush1.bf16.msra.mxu0 %v524
    %735 = vmatprep.subr.bf16.mxu0 %v527
    %736 = vmatpush1.bf16.msra.mxu0 %v526
    %737 = vmatprep.subr.bf16.mxu0 %v529
    %738 = vmatpush1.bf16.msra.mxu0 %v528
    %739 = vmatprep.subr.bf16.mxu0 %v531
    %740 = vmatpush1.bf16.msra.mxu0 %v530
    %741 = vmatprep.mubr.bf16.mxu0 %v164
    %742 = vmatmul.mubr.bf16.gmra.mrb[0].mxu0 %v163
    %v743 = vpop.f32.mrb[0].mxu0
    %v744 = vadd.f32 %v703, %v743
    %v745 = vpop.f32.mrb[0].mxu0
    %v746 = vadd.f32 %v705, %v745
    %v747 = vpop.f32.mrb[0].mxu0
    %v748 = vpop.f32.mrb[0].mxu0
    %749 = vdwg.mxu0
    %750 = vmatprep.subr.bf16.mxu0 %v533
    %751 = vmatpush1.bf16.msra.mxu0 %v532
    %752 = vmatprep.subr.bf16.mxu0 %v535
    %753 = vmatpush1.bf16.msra.mxu0 %v534
    %754 = vmatprep.subr.bf16.mxu0 %v537
    %755 = vmatpush1.bf16.msra.mxu0 %v536
    %756 = vmatprep.subr.bf16.mxu0 %v539
    %757 = vmatpush1.bf16.msra.mxu0 %v538
    %758 = vmatprep.subr.bf16.mxu0 %v541
    %759 = vmatpush1.bf16.msra.mxu0 %v540
    %760 = vmatprep.subr.bf16.mxu0 %v543
    %761 = vmatpush1.bf16.msra.mxu0 %v542
    %762 = vmatprep.subr.bf16.mxu0 %v545
    %763 = vmatpush1.bf16.msra.mxu0 %v544
    %764 = vmatprep.subr.bf16.mxu0 %v547
    %765 = vmatpush1.bf16.msra.mxu0 %v546
    %766 = vmatprep.subr.bf16.mxu0 %v549
    %767 = vmatpush1.bf16.msra.mxu0 %v548
    %768 = vmatprep.subr.bf16.mxu0 %v551
    %769 = vmatpush1.bf16.msra.mxu0 %v550
    %770 = vmatprep.subr.bf16.mxu0 %v553
    %771 = vmatpush1.bf16.msra.mxu0 %v552
    %772 = vmatprep.subr.bf16.mxu0 %v555
    %773 = vmatpush1.bf16.msra.mxu0 %v554
    %774 = vmatprep.subr.bf16.mxu0 %v557
    %775 = vmatpush1.bf16.msra.mxu0 %v556
    %776 = vmatprep.subr.bf16.mxu0 %v559
    %777 = vmatpush1.bf16.msra.mxu0 %v558
    %778 = vmatprep.subr.bf16.mxu0 %v561
    %779 = vmatpush1.bf16.msra.mxu0 %v560
    %780 = vmatprep.subr.bf16.mxu0 %v563
    %781 = vmatpush1.bf16.msra.mxu0 %v562
    %782 = vmatprep.mubr.bf16.mxu0 %v166
    %783 = vmatmul.mubr.bf16.gmra.mrb[0].mxu0 %v165
    %v784 = vpop.f32.mrb[0].mxu0
    %v785 = vadd.f32 %v744, %v784
    %v786 = vpop.f32.mrb[0].mxu0
    %v787 = vadd.f32 %v746, %v786
    %v788 = vpop.f32.mrb[0].mxu0
    %v789 = vpop.f32.mrb[0].mxu0
    %790 = vdwg.mxu0
    %791 = vmatprep.subr.bf16.mxu0 %v565
    %792 = vmatpush1.bf16.msra.mxu0 %v564
    %793 = vmatprep.subr.bf16.mxu0 0
    %794 = vmatpush1.bf16.msra.mxu0 0
    %795 = vmatprep.subr.bf16.mxu0 0
    %796 = vmatpush1.bf16.msra.mxu0 0
    %797 = vmatprep.subr.bf16.mxu0 0
    %798 = vmatpush1.bf16.msra.mxu0 0
    %799 = vmatprep.subr.bf16.mxu0 0
    %800 = vmatpush1.bf16.msra.mxu0 0
    %801 = vmatprep.subr.bf16.mxu0 0
    %802 = vmatpush1.bf16.msra.mxu0 0
    %803 = vmatprep.subr.bf16.mxu0 0
    %804 = vmatpush1.bf16.msra.mxu0 0
    %805 = vmatprep.subr.bf16.mxu0 0
    %806 = vmatpush1.bf16.msra.mxu0 0
    %807 = vmatprep.subr.bf16.mxu0 0
    %808 = vmatpush1.bf16.msra.mxu0 0
    %809 = vmatprep.subr.bf16.mxu0 0
    %810 = vmatpush1.bf16.msra.mxu0 0
    %811 = vmatprep.subr.bf16.mxu0 0
    %812 = vmatpush1.bf16.msra.mxu0 0
    %813 = vmatprep.subr.bf16.mxu0 0
    %814 = vmatpush1.bf16.msra.mxu0 0
    %815 = vmatprep.subr.bf16.mxu0 0
    %816 = vmatpush1.bf16.msra.mxu0 0
    %817 = vmatprep.subr.bf16.mxu0 0
    %818 = vmatpush1.bf16.msra.mxu0 0
    %819 = vmatprep.subr.bf16.mxu0 0
    %820 = vmatpush1.bf16.msra.mxu0 0
    %821 = vmatprep.subr.bf16.mxu0 0
    %822 = vmatpush1.bf16.msra.mxu0 0
    %823 = vmatprep.mubr.bf16.mxu0 0
    %824 = vmatmul.mubr.bf16.gmra.mrb[0].mxu0 %v666
    %v825 = vpop.f32.mrb[0].mxu0
    %v826 = vadd.f32 %v785, %v825
    %v827 = vpop.f32.mrb[0].mxu0
    %v828 = vadd.f32 %v787, %v827
    %v829 = vpop.f32.mrb[0].mxu0
    %v830 = vpop.f32.mrb[0].mxu0
    %831 = vdwg.mxu0
    %v832 = vrot.slane %v826, 4
    %v833 = vadd.f32 %v826, %v832
    %v834 = vrot.slane %v833, 2
    %v835 = vadd.f32 %v833, %v834
    %v836 = vrot.slane %v835, 1
    %v837 = vadd.f32 %v835, %v836
    %v838 = vrot.slane %v828, 4
    %v839 = vadd.f32 %v828, %v838
    %v840 = vrot.slane %v839, 2
    %v841 = vadd.f32 %v839, %v840
    %v842 = vrot.slane %v841, 1
    %v843 = vadd.f32 %v841, %v842
    %v844 = vmul.f32 %v837, 0.125
    %v845 = vmul.f32 %v843, 0.125
    %v846 = vmul.f32 %v826, %v826
    %v847 = vmul.f32 %v828, %v828
    %v848 = vrot.slane %v846, 4
    %v849 = vadd.f32 %v846, %v848
    %v850 = vrot.slane %v849, 2
    %v851 = vadd.f32 %v849, %v850
    %v852 = vrot.slane %v851, 1
    %v853 = vadd.f32 %v851, %v852
    %v854 = vrot.slane %v847, 4
    %v855 = vadd.f32 %v847, %v854
    %v856 = vrot.slane %v855, 2
    %v857 = vadd.f32 %v855, %v856
    %v858 = vrot.slane %v857, 1
    %v859 = vadd.f32 %v857, %v858
    %v860 = vmul.f32 %v853, 0.125
    %v861 = vmul.f32 %v859, 0.125
    %v862 = vmul.f32 %v844, %v844
    %v863 = vmul.f32 %v845, %v845
    %v864 = vsub.f32 %v860, %v862
    %v865 = vsub.f32 %v861, %v863
    %v866 = vmax.f32 %v864, 0.0
    %v867 = vmax.f32 %v865, 0.0
    %v868 = vld [vmem:[%s2] sm:$0x3]
    %v869 = vadd.f32 %v866, 1e-05
    %v870 = vadd.f32 %v867, 1e-05
    %v871 = vrsqrt.pop %v869
    %v872 = vrsqrt.pop %v870
    %v875 = vcombine.low %v871, %v872
    %v877 = vunpack.c.l.s4 1966171168
    %v878 = vunpack.c.0.s8 %v877
    %v879 = vlaneseq
    %v880 = vshrl.u32 %v879, 7
    %v881 = vsub.s32 %v878, %v880
    %v882 = vrot.slane %v875, %v881
    %v884 = vunpack.c.l.s4 1966171168
    %v885 = vunpack.c.0.s8 %v884
    %v886 = vlaneseq
    %v887 = vshrl.u32 %v886, 7
    %v888 = vsub.s32 %v885, %v887
    %v889 = vrot.slane %v882, %v888
    %v891 = vmul.f32 %v868, %v889
    %v892 = vld [vmem:[%s3] sm:$0x3]
    %v895 = vcombine.low %v844, %v845
    %v897 = vunpack.c.l.s4 1966171168
    %v898 = vunpack.c.0.s8 %v897
    %v899 = vlaneseq
    %v900 = vshrl.u32 %v899, 7
    %v901 = vsub.s32 %v898, %v900
    %v902 = vrot.slane %v895, %v901
    %v904 = vunpack.c.l.s4 1966171168
    %v905 = vunpack.c.0.s8 %v904
    %v906 = vlaneseq
    %v907 = vshrl.u32 %v906, 7
    %v908 = vsub.s32 %v905, %v907
    %v909 = vrot.slane %v902, %v908
    %v911 = vmul.f32 %v891, %v909
    %v912 = vsub.f32 %v892, %v911
    %v914 = vlaneseq
    %v915 = vshrl.u32 %v914, 7
    %v916 = vsub.s32 0, %v915
    %v917 = vrot.slane %v891, %v916
    %v918 = vlaneseq
    %v919 = vshrl.u32 %v918, 7
    %v920 = vsub.s32 1, %v919
    %v921 = vrot.slane %v891, %v920
    %v924 = vmul.f32 %v826, %v917
    %v925 = vmul.f32 %v828, %v921
    %v927 = vlaneseq
    %v928 = vshrl.u32 %v927, 7
    %v929 = vsub.s32 0, %v928
    %v930 = vrot.slane %v912, %v929
    %v931 = vlaneseq
    %v932 = vshrl.u32 %v931, 7
    %v933 = vsub.s32 1, %v932
    %v934 = vrot.slane %v912, %v933
    %v937 = vadd.f32 %v924, %v930
    %v938 = vadd.f32 %v925, %v934
    %v939 = vmax.f32 %v937, 0.0
    %v940 = vmax.f32 %v938, 0.0
    %v941 = vpack.c.bf16 %v939, %v939
    %v942 = vpack.c.bf16 %v940, %v940
    %v943 = vld [vmem:[%s4] sm:$0xf]
    %v944 = vld [vmem:[%s4 + $0x4] sm:$0xf]
    %v945 = vld [vmem:[%s4 + $0x8] sm:$0xf]
    %v946 = vld [vmem:[%s4 + $0xc] sm:$0xf]
    %v947 = vld [vmem:[%s4 + $0x10] sm:$0xf]
    %v948 = vld [vmem:[%s4 + $0x14] sm:$0xf]
    %v949 = vld [vmem:[%s4 + $0x18] sm:$0xf]
    %v950 = vld [vmem:[%s4 + $0x1c] sm:$0xf]
    %v951 = vld [vmem:[%s4 + $0x20] sm:$0xf]
    %v952 = vld [vmem:[%s4 + $0x24] sm:$0xf]
    %v953 = vld [vmem:[%s4 + $0x28] sm:$0xf]
    %v954 = vld [vmem:[%s4 + $0x2c] sm:$0xf]
    %v955 = vld [vmem:[%s4 + $0x30] sm:$0xf]
    %v956 = vld [vmem:[%s4 + $0x34] sm:$0xf]
    %v957 = vld [vmem:[%s4 + $0x38] sm:$0xf]
    %v958 = vld [vmem:[%s4 + $0x3c] sm:$0xf]
    %v959 = vld [vmem:[%s4 + $0x40] sm:$0xf]
    %v960 = vld [vmem:[%s4 + $0x44] sm:$0xf]
    %v961 = vld [vmem:[%s4 + $0x48] sm:$0xf]
    %v962 = vld [vmem:[%s4 + $0x4c] sm:$0xf]
    %v963 = vld [vmem:[%s4 + $0x50] sm:$0xf]
    %v964 = vld [vmem:[%s4 + $0x54] sm:$0xf]
    %v965 = vld [vmem:[%s4 + $0x58] sm:$0xf]
    %v966 = vld [vmem:[%s4 + $0x5c] sm:$0xf]
    %v967 = vld [vmem:[%s4 + $0x60] sm:$0xf]
    %v968 = vld [vmem:[%s4 + $0x64] sm:$0xf]
    %v969 = vld [vmem:[%s4 + $0x68] sm:$0xf]
    %v970 = vld [vmem:[%s4 + $0x6c] sm:$0xf]
    %v971 = vld [vmem:[%s4 + $0x70] sm:$0xf]
    %v972 = vld [vmem:[%s4 + $0x74] sm:$0xf]
    %v973 = vld [vmem:[%s4 + $0x78] sm:$0xf]
    %v974 = vld [vmem:[%s4 + $0x7c] sm:$0xf]
    %v1007 = vunpack.c.l.b16 %v943
    %v1008 = vunpack.c.l.b16 %v944
    %v1009 = vunpack.c.l.b16 %v945
    %v1010 = vunpack.c.l.b16 %v946
    %v1011 = vunpack.c.l.b16 %v947
    %v1012 = vunpack.c.l.b16 %v948
    %v1013 = vunpack.c.l.b16 %v949
    %v1014 = vunpack.c.l.b16 %v950
    %v1015 = vunpack.c.l.b16 %v951
    %v1016 = vunpack.c.l.b16 %v952
    %v1017 = vunpack.c.l.b16 %v953
    %v1018 = vunpack.c.l.b16 %v954
    %v1019 = vunpack.c.l.b16 %v955
    %v1020 = vunpack.c.l.b16 %v956
    %v1021 = vunpack.c.l.b16 %v957
    %v1022 = vunpack.c.l.b16 %v958
    %v1023 = vunpack.c.l.b16 %v959
    %v1024 = vunpack.c.l.b16 %v960
    %v1025 = vunpack.c.l.b16 %v961
    %v1026 = vunpack.c.l.b16 %v962
    %v1027 = vunpack.c.l.b16 %v963
    %v1028 = vunpack.c.l.b16 %v964
    %v1029 = vunpack.c.l.b16 %v965
    %v1030 = vunpack.c.l.b16 %v966
    %v1031 = vunpack.c.l.b16 %v967
    %v1032 = vunpack.c.l.b16 %v968
    %v1033 = vunpack.c.l.b16 %v969
    %v1034 = vunpack.c.l.b16 %v970
    %v1035 = vunpack.c.l.b16 %v971
    %v1036 = vunpack.c.l.b16 %v972
    %v1037 = vunpack.c.l.b16 %v973
    %v1038 = vunpack.c.l.b16 %v974
    %v1039 = vpack.c.b16 %v1008, %v1007
    %v1040 = vpack.c.b16 %v1010, %v1009
    %v1041 = vpack.c.b16 %v1012, %v1011
    %v1042 = vpack.c.b16 %v1014, %v1013
    %v1043 = vpack.c.b16 %v1016, %v1015
    %v1044 = vpack.c.b16 %v1018, %v1017
    %v1045 = vpack.c.b16 %v1020, %v1019
    %v1046 = vpack.c.b16 %v1022, %v1021
    %v1047 = vpack.c.b16 %v1024, %v1023
    %v1048 = vpack.c.b16 %v1026, %v1025
    %v1049 = vpack.c.b16 %v1028, %v1027
    %v1050 = vpack.c.b16 %v1030, %v1029
    %v1051 = vpack.c.b16 %v1032, %v1031
    %v1052 = vpack.c.b16 %v1034, %v1033
    %v1053 = vpack.c.b16 %v1036, %v1035
    %v1054 = vpack.c.b16 %v1038, %v1037
    %1071 = vmatprep.subr.bf16.mxu0 0
    %1072 = vmatpush1.bf16.msra.mxu0 %v1039
    %1073 = vmatprep.subr.bf16.mxu0 0
    %1074 = vmatpush1.bf16.msra.mxu0 %v1040
    %1075 = vmatprep.subr.bf16.mxu0 0
    %1076 = vmatpush1.bf16.msra.mxu0 %v1041
    %1077 = vmatprep.subr.bf16.mxu0 0
    %1078 = vmatpush1.bf16.msra.mxu0 %v1042
    %1079 = vmatprep.subr.bf16.mxu0 0
    %1080 = vmatpush1.bf16.msra.mxu0 %v1043
    %1081 = vmatprep.subr.bf16.mxu0 0
    %1082 = vmatpush1.bf16.msra.mxu0 %v1044
    %1083 = vmatprep.subr.bf16.mxu0 0
    %1084 = vmatpush1.bf16.msra.mxu0 %v1045
    %1085 = vmatprep.subr.bf16.mxu0 0
    %1086 = vmatpush1.bf16.msra.mxu0 %v1046
    %1087 = vmatprep.subr.bf16.mxu0 0
    %1088 = vmatpush1.bf16.msra.mxu0 %v1047
    %1089 = vmatprep.subr.bf16.mxu0 0
    %1090 = vmatpush1.bf16.msra.mxu0 %v1048
    %1091 = vmatprep.subr.bf16.mxu0 0
    %1092 = vmatpush1.bf16.msra.mxu0 %v1049
    %1093 = vmatprep.subr.bf16.mxu0 0
    %1094 = vmatpush1.bf16.msra.mxu0 %v1050
    %1095 = vmatprep.subr.bf16.mxu0 0
    %1096 = vmatpush1.bf16.msra.mxu0 %v1051
    %1097 = vmatprep.subr.bf16.mxu0 0
    %1098 = vmatpush1.bf16.msra.mxu0 %v1052
    %1099 = vmatprep.subr.bf16.mxu0 0
    %1100 = vmatpush1.bf16.msra.mxu0 %v1053
    %1101 = vmatprep.subr.bf16.mxu0 0
    %1102 = vmatpush1.bf16.msra.mxu0 %v1054
    %1103 = vmatprep.mubr.bf16.mxu0 %v942
    %1104 = vmatmul.mubr.bf16.gmra.mrb[0].mxu0 %v941
    %v1105 = vpop.f32.mrb[0].mxu0
    %v1106 = vadd.f32 0.0, %v1105
    %v1107 = vpop.f32.mrb[0].mxu0
    %v1108 = vpop.f32.mrb[0].mxu0
    %v1109 = vpop.f32.mrb[0].mxu0
    %1110 = vdwg.mxu0
    %v1111 = vrot.slane %v1106, 4
    %v1112 = vadd.f32 %v1106, %v1111
    %v1113 = vrot.slane %v1112, 2
    %v1114 = vadd.f32 %v1112, %v1113
    %v1115 = vrot.slane %v1114, 1
    %v1116 = vadd.f32 %v1114, %v1115
    %v1117 = vmul.f32 %v1116, 0.125
    %v1118 = vmul.f32 %v1106, %v1106
    %v1119 = vrot.slane %v1118, 4
    %v1120 = vadd.f32 %v1118, %v1119
    %v1121 = vrot.slane %v1120, 2
    %v1122 = vadd.f32 %v1120, %v1121
    %v1123 = vrot.slane %v1122, 1
    %v1124 = vadd.f32 %v1122, %v1123
    %v1125 = vmul.f32 %v1124, 0.125
    %v1126 = vmul.f32 %v1117, %v1117
    %v1127 = vsub.f32 %v1125, %v1126
    %v1128 = vmax.f32 %v1127, 0.0
    %v1129 = vld [vmem:[%s5] sm:$0x1]
    %v1130 = vadd.f32 %v1128, 1e-05
    %v1131 = vrsqrt.pop %v1130
    %v1132 = vmul.f32 %v1129, %v1131
    %v1133 = vld [vmem:[%s6] sm:$0x1]
    %v1134 = vmul.f32 %v1132, %v1117
    %v1135 = vsub.f32 %v1133, %v1134
    %v1137 = vlaneseq
    %v1138 = vshrl.u32 %v1137, 7
    %v1139 = vsub.s32 0, %v1138
    %v1140 = vrot.slane %v1132, %v1139
    %v1142 = vmul.f32 %v1106, %v1140
    %v1144 = vlaneseq
    %v1145 = vshrl.u32 %v1144, 7
    %v1146 = vsub.s32 0, %v1145
    %v1147 = vrot.slane %v1135, %v1146
    %v1149 = vadd.f32 %v1142, %v1147
    %v1150 = vmax.f32 %v1149, 0.0
    %v1151 = vpack.c.bf16 %v1150, %v1150
    %v1152 = vld [vmem:[%s7] sm:$0xf]
    %v1153 = vld [vmem:[%s7 + $0x4] sm:$0xf]
    %v1154 = vld [vmem:[%s7 + $0x8] sm:$0xf]
    %v1155 = vld [vmem:[%s7 + $0xc] sm:$0xf]
    %v1156 = vld [vmem:[%s7 + $0x10] sm:$0xf]
    %v1157 = vld [vmem:[%s7 + $0x14] sm:$0xf]
    %v1158 = vld [vmem:[%s7 + $0x18] sm:$0xf]
    %v1159 = vld [vmem:[%s7 + $0x1c] sm:$0xf]
    %v1160 = vld [vmem:[%s7 + $0x20] sm:$0xf]
    %v1161 = vld [vmem:[%s7 + $0x24] sm:$0xf]
    %v1162 = vld [vmem:[%s7 + $0x28] sm:$0xf]
    %v1163 = vld [vmem:[%s7 + $0x2c] sm:$0xf]
    %v1164 = vld [vmem:[%s7 + $0x30] sm:$0xf]
    %v1165 = vld [vmem:[%s7 + $0x34] sm:$0xf]
    %v1166 = vld [vmem:[%s7 + $0x38] sm:$0xf]
    %v1167 = vld [vmem:[%s7 + $0x3c] sm:$0xf]
    %v1168 = vld [vmem:[%s8] sm:$0x1]
    %v1170 = vlaneseq
    %v1171 = vshrl.u32 %v1170, 7
    %v1172 = vsub.s32 0, %v1171
    %v1173 = vrot.slane %v1168, %v1172
    %v1191 = vunpack.c.l.b16 %v1152
    %v1192 = vunpack.c.l.b16 %v1153
    %v1193 = vunpack.c.l.b16 %v1154
    %v1194 = vunpack.c.l.b16 %v1155
    %v1195 = vunpack.c.l.b16 %v1156
    %v1196 = vunpack.c.l.b16 %v1157
    %v1197 = vunpack.c.l.b16 %v1158
    %v1198 = vunpack.c.l.b16 %v1159
    %v1199 = vunpack.c.l.b16 %v1160
    %v1200 = vunpack.c.l.b16 %v1161
    %v1201 = vunpack.c.l.b16 %v1162
    %v1202 = vunpack.c.l.b16 %v1163
    %v1203 = vunpack.c.l.b16 %v1164
    %v1204 = vunpack.c.l.b16 %v1165
    %v1205 = vunpack.c.l.b16 %v1166
    %v1206 = vunpack.c.l.b16 %v1167
    %v1207 = vpack.c.b16 %v1192, %v1191
    %v1208 = vpack.c.b16 %v1194, %v1193
    %v1209 = vpack.c.b16 %v1196, %v1195
    %v1210 = vpack.c.b16 %v1198, %v1197
    %v1211 = vpack.c.b16 %v1200, %v1199
    %v1212 = vpack.c.b16 %v1202, %v1201
    %v1213 = vpack.c.b16 %v1204, %v1203
    %v1214 = vpack.c.b16 %v1206, %v1205
    %1223 = vmatprep.subr.bf16.mxu0 0
    %1224 = vmatpush1.bf16.msra.mxu0 %v1207
    %1225 = vmatprep.subr.bf16.mxu0 0
    %1226 = vmatpush1.bf16.msra.mxu0 %v1208
    %1227 = vmatprep.subr.bf16.mxu0 0
    %1228 = vmatpush1.bf16.msra.mxu0 %v1209
    %1229 = vmatprep.subr.bf16.mxu0 0
    %1230 = vmatpush1.bf16.msra.mxu0 %v1210
    %1231 = vmatprep.subr.bf16.mxu0 0
    %1232 = vmatpush1.bf16.msra.mxu0 %v1211
    %1233 = vmatprep.subr.bf16.mxu0 0
    %1234 = vmatpush1.bf16.msra.mxu0 %v1212
    %1235 = vmatprep.subr.bf16.mxu0 0
    %1236 = vmatpush1.bf16.msra.mxu0 %v1213
    %1237 = vmatprep.subr.bf16.mxu0 0
    %1238 = vmatpush1.bf16.msra.mxu0 %v1214
    %1239 = vmatprep.subr.bf16.mxu0 0
    %1240 = vmatpush1.bf16.msra.mxu0 0
    %1241 = vmatprep.subr.bf16.mxu0 0
    %1242 = vmatpush1.bf16.msra.mxu0 0
    %1243 = vmatprep.subr.bf16.mxu0 0
    %1244 = vmatpush1.bf16.msra.mxu0 0
    %1245 = vmatprep.subr.bf16.mxu0 0
    %1246 = vmatpush1.bf16.msra.mxu0 0
    %1247 = vmatprep.subr.bf16.mxu0 0
    %1248 = vmatpush1.bf16.msra.mxu0 0
    %1249 = vmatprep.subr.bf16.mxu0 0
    %1250 = vmatpush1.bf16.msra.mxu0 0
    %1251 = vmatprep.subr.bf16.mxu0 0
    %1252 = vmatpush1.bf16.msra.mxu0 0
    %1253 = vmatprep.subr.bf16.mxu0 0
    %1254 = vmatpush1.bf16.msra.mxu0 0
    %1255 = vmatprep.mubr.bf16.mxu0 0
    %1256 = vmatmul.mubr.bf16.gmra.mrb[0].mxu0 %v1151
    %v1257 = vpop.f32.mrb[0].mxu0
    %v1258 = vadd.f32 %v1173, %v1257
    %v1259 = vpop.f32.mrb[0].mxu0
    %v1260 = vpop.f32.mrb[0].mxu0
    %v1261 = vpop.f32.mrb[0].mxu0
    %1262 = vdwg.mxu0
    %1263 = vmax.xlane.f32.xlu0 %v1258
    %v1264 = vpop.xlane.xlu0 %1263
    %v1265 = vsub.f32 %v1258, %v1264
    %v1266 = vmul.f32 %v1265, 1.442695
    %v1267 = vpow.pop %v1266
    %1268 = vadd.xlane.f32.xlu0 %v1267
    %v1269 = vpop.xlane.xlu0 %1268
    %v1270 = vlog2.pop %v1269
    %v1271 = vmul.f32 %v1270, 0.6931472
    %v1272 = vsub.f32 %v1265, %v1271
    %1273 = vst [vmem:[#allocation5] sm:$0xff] %v1272
    // Predicated region
    $region42: #{mnist_mlp_forward.1} parent=1 // pred_check
      _
    $region43: #{mnist_mlp_forward.1} parent=1 // pred_check_branch
      %1275 = sbr.rel (0) target = $region45
    $region44: #{mnist_mlp_forward.1} parent=1 // pred_region
      %s1277 = ssub.s32 128, 128
      %1278 = vsyncadd [#allocation4], %s1277
      %s1280 = sshll.u32 [#allocation5], 4
      %s1281 = int_to_ptr.vmem [resolvable:$true] %s1280
      %1283 = dma.vmem_to_hbm [thread:$0]  %s1281, 128, %s9, [#allocation4]
    $region45: #{mnist_mlp_forward.1} parent=1 // pred_fallthru
      _
    // Predicated region
    $region46: #{mnist_mlp_forward.1} parent=1 // pred_check
      _
    $region47: #{mnist_mlp_forward.1} parent=1 // pred_check_branch
      %1285 = sbr.rel (0) target = $region49
    $region48: #{mnist_mlp_forward.1} parent=1 // pred_region
      %1286 = dma.done [#allocation4], 128
    $region49: #{mnist_mlp_forward.1} parent=1 // pred_fallthru
      _
    %1287 = vsyncpa [#allocation3], 1
    %1288 = vsyncpa [#allocation4], 1

</llo_original>
